<compile_context>
chip_gen: v7x
topology: tpu7x:2x2x1
jax: 0.10.0
libtpu: 0.0.40
codegen_flags: <defaults>
</compile_context>

<pallas_src>
import functools
import math

import jax
import jax.numpy as jnp
from jax import lax
from jax.experimental import pallas as pl
from jax.experimental.pallas import tpu as pltpu


# ----------------------------------------------------------------------------
# Causal Conv1d (stride 1) Pallas kernel
# ----------------------------------------------------------------------------
def _causal_conv_kernel(x_ref, w_ref, b_ref, o_ref, *scratch, K, dilation, use_bias):
    """One (batch, L-tile) grid step.

    x_ref: (1, C_in, TL)        current length tile
    w_ref: (C_out, K*C_in)      folded weight, lane dim = K*C_in (dense)
    b_ref: (C_out, 1)
    o_ref: (1, C_out, TL)
    scratch[0] (if K>1): (C_in, halo) VMEM carrying the previous tile's tail.
    """
    TL = x_ref.shape[2]
    halo = (K - 1) * dilation
    x = x_ref[0, :, :]                                   # (C_in, TL)

    if halo > 0:
        halo_ref = scratch[0]

        @pl.when(pl.program_id(1) == 0)
        def _():
            # In-kernel causal left padding: zero left context at the first tile.
            halo_ref[...] = jnp.zeros_like(halo_ref)

        ext = jnp.concatenate([halo_ref[...], x], axis=1)            # (C_in, halo+TL)
        taps = [ext[:, k * dilation:k * dilation + TL] for k in range(K)]
        stacked = jnp.concatenate(taps, axis=0)                      # (K*C_in, TL)
        # Carry this tile's tail as the next tile's left context.
        halo_ref[...] = x[:, TL - halo:]
    else:
        stacked = x                                                  # K == 1

    # Single full-depth contraction on the MXU, f32 accumulate.
    y = jnp.dot(w_ref[...], stacked, preferred_element_type=jnp.float32)
    if use_bias:
        y = y + b_ref[...]                                           # (C_out,1) bcast
    o_ref[0, :, :] = y.astype(o_ref.dtype)


def causal_conv1d(x, weight, bias, *, dilation=1, tile_l=512):
    """Causal (left-padded) Conv1d with stride 1, matching Conv(is_causal=True).
    For kernel_size == 1 this is identical to a plain Conv1d.

    x:      (B, C_in, L) float32
    weight: (C_out, C_in, K)  (PyTorch Conv1d layout)
    bias:   (C_out,) or None
    returns (B, C_out, L)
    """
    B, C_in, L = x.shape
    C_out, C_in_w, K = weight.shape
    assert C_in_w == C_in
    halo = (K - 1) * dilation

    if L <= tile_l:
        TL, n_l = L, 1
    else:
        assert tile_l % 128 == 0 and L % tile_l == 0, (L, tile_l)
        TL, n_l = tile_l, L // tile_l
    assert halo <= TL, "dilation window must fit within one length tile"

    # Fold K into the contraction: w_flat[o, k*C_in + c] = weight[o, c, k].
    w_flat = jnp.transpose(weight, (0, 2, 1)).reshape(C_out, K * C_in)
    use_bias = bias is not None
    bias2d = (bias if use_bias else jnp.zeros((C_out,), x.dtype)).reshape(C_out, 1)

    kernel = functools.partial(_causal_conv_kernel, K=K, dilation=dilation,
                               use_bias=use_bias)
    scratch = [pltpu.VMEM((C_in, halo), jnp.float32)] if halo > 0 else []
    # Halo carry makes the L axis sequential for K>1; batch stays megacore-parallel.
    sem = ("parallel", "arbitrary") if halo > 0 else ("parallel", "parallel")

    cost = pl.CostEstimate(
        flops=2 * B * C_out * K * C_in * L,
        transcendentals=0,
        bytes_accessed=4 * (x.size + w_flat.size + bias2d.size + B * C_out * L))

    return pl.pallas_call(
        kernel,
        out_shape=jax.ShapeDtypeStruct((B, C_out, L), x.dtype),
        grid_spec=pltpu.PrefetchScalarGridSpec(
            num_scalar_prefetch=0,
            grid=(B, n_l),
            in_specs=[
                pl.BlockSpec((1, C_in, TL), lambda b, l: (b, 0, l)),
                pl.BlockSpec((C_out, K * C_in), lambda b, l: (0, 0)),
                pl.BlockSpec((C_out, 1), lambda b, l: (0, 0)),
            ],
            out_specs=pl.BlockSpec((1, C_out, TL), lambda b, l: (b, 0, l)),
            scratch_shapes=scratch,
        ),
        compiler_params=pltpu.CompilerParams(dimension_semantics=sem),
        cost_estimate=cost,
    )(x, w_flat, bias2d)


# ----------------------------------------------------------------------------
# Fused gated activation: tanh(z[:R]) * sigmoid(z[R:]) with z = in_act + cond
# ----------------------------------------------------------------------------
def _gated_act_kernel(a_ref, c_ref, o_ref, *, R):
    z = a_ref[0, :, :] + c_ref[0, :, :]                  # (2R, TL)
    o_ref[0, :, :] = (jnp.tanh(z[:R, :]) *
                      jax.nn.sigmoid(z[R:, :])).astype(o_ref.dtype)


def gated_activation(in_act, cond, n_residual_channels, *, tile_l=512):
    B, C2, L = in_act.shape
    R = n_residual_channels
    assert C2 == 2 * R and cond.shape == in_act.shape
    if L <= tile_l:
        TL, n_l = L, 1
    else:
        assert tile_l % 128 == 0 and L % tile_l == 0
        TL, n_l = tile_l, L // tile_l

    return pl.pallas_call(
        functools.partial(_gated_act_kernel, R=R),
        out_shape=jax.ShapeDtypeStruct((B, R, L), in_act.dtype),
        grid_spec=pltpu.PrefetchScalarGridSpec(
            num_scalar_prefetch=0,
            grid=(B, n_l),
            in_specs=[pl.BlockSpec((1, 2 * R, TL), lambda b, l: (b, 0, l)),
                      pl.BlockSpec((1, 2 * R, TL), lambda b, l: (b, 0, l))],
            out_specs=pl.BlockSpec((1, R, TL), lambda b, l: (b, 0, l)),
        ),
        compiler_params=pltpu.CompilerParams(
            dimension_semantics=("parallel", "parallel")),
    )(in_act, cond)


# ----------------------------------------------------------------------------
# Non-Pallas pieces (upsample ConvTranspose1d, embedding) and reference convs
# ----------------------------------------------------------------------------
def conv_transpose1d(x, w, b, *, stride):
    """Matches torch.nn.ConvTranspose1d(padding=0). x:(B,C_in,L) w:(C_in,C_out,K)."""
    C_in, C_out, K = w.shape
    w_f = jnp.flip(jnp.transpose(w, (1, 0, 2)), axis=2)      # (C_out, C_in, K)
    y = lax.conv_general_dilated(
        x, w_f, window_strides=(1,), padding=[(K - 1, K - 1)],
        lhs_dilation=(stride,), dimension_numbers=("NCH", "OIH", "NCH"),
        precision=lax.Precision.HIGHEST)
    return y + b.reshape(1, C_out, 1)


def causal_conv1d_ref(x, w, b, *, dilation=1):
    K = w.shape[2]
    pad = (K - 1) * dilation
    xp = jnp.pad(x, ((0, 0), (0, 0), (pad, 0)))
    y = lax.conv_general_dilated(
        xp, w, window_strides=(1,), padding="VALID", rhs_dilation=(dilation,),
        dimension_numbers=("NCH", "OIH", "NCH"), precision=lax.Precision.HIGHEST)
    if b is not None:
        y = y + b.reshape(1, -1, 1)
    return y


# ----------------------------------------------------------------------------
# WaveNet forward (Pallas) and pure-JAX reference
# ----------------------------------------------------------------------------
def wavenet_forward(params, features, forward_input, cfg, *, tile_l=128):
    nl = cfg["n_layers"]
    R = cfg["n_residual_channels"]
    B, T = forward_input.shape
    loop_factor = int(math.floor(math.log2(cfg["max_dilation"]))) + 1

    # TODO(synk): ConvTranspose1d upsample and the embedding gather stay in XLA;
    # the conv / gate stack (the hot path) is Pallas.
    cond = conv_transpose1d(features, params["upsample_w"], params["upsample_b"],
                            stride=cfg["upsamp_stride"])
    assert cond.shape[2] >= T
    cond = cond[:, :, :T]

    x = jnp.take(params["embed"], forward_input.astype(jnp.int32), axis=0)
    x = jnp.transpose(x, (0, 2, 1))                           # (B, R, T)

    # Pad the time axis ONCE to a multiple of the length tile so every Pallas
    # call uses lane-dense 128-multiple blocks; everything is causal so the
    # zero tail cannot affect the first T samples.
    Lp = T if T <= tile_l else pl.cdiv(T, tile_l) * tile_l
    if Lp != T:
        x = jnp.pad(x, ((0, 0), (0, 0), (0, Lp - T)))
        cond = jnp.pad(cond, ((0, 0), (0, 0), (0, Lp - T)))

    cond_acts = causal_conv1d(cond, params["cond_w"], params["cond_b"], tile_l=tile_l)
    cond_acts = cond_acts.reshape(B, nl, 2 * R, Lp)

    output = None
    for i in range(nl):
        d = 2 ** (i % loop_factor)
        in_act = causal_conv1d(x, params["dilate_w"][i], params["dilate_b"][i],
                               dilation=d, tile_l=tile_l)
        acts = gated_activation(in_act, cond_acts[:, i], R, tile_l=tile_l)
        if i < nl - 1:  # the last layer's forward_input update never affects output
            x = causal_conv1d(acts, params["res_w"][i], params["res_b"][i],
                              tile_l=tile_l) + x
        skip = causal_conv1d(acts, params["skip_w"][i], params["skip_b"][i],
                             tile_l=tile_l)
        output = skip if i == 0 else output + skip

    output = jax.nn.relu(output)
    output = causal_conv1d(output, params["conv_out_w"], None, tile_l=tile_l)
    output = jax.nn.relu(output)
    output = causal_conv1d(output, params["conv_end_w"], None, tile_l=tile_l)

    output = output[:, :, :T]
    # Zero the first sample and shift right by one (matches the PyTorch tail).
    return jnp.concatenate(
        [jnp.zeros_like(output[:, :, :1]), output[:, :, :T - 1]], axis=2)


def wavenet_forward_ref(params, features, forward_input, cfg):
    nl = cfg["n_layers"]
    R = cfg["n_residual_channels"]
    B, T = forward_input.shape
    loop_factor = int(math.floor(math.log2(cfg["max_dilation"]))) + 1

    cond = conv_transpose1d(features, params["upsample_w"], params["upsample_b"],
                            stride=cfg["upsamp_stride"])[:, :, :T]
    x = jnp.transpose(jnp.take(params["embed"], forward_input.astype(jnp.int32),
                               axis=0), (0, 2, 1))
    cond_acts = causal_conv1d_ref(cond, params["cond_w"], params["cond_b"])
    cond_acts = cond_acts.reshape(B, nl, 2 * R, T)

    output = None
    for i in range(nl):
        d = 2 ** (i % loop_factor)
        in_act = causal_conv1d_ref(x, params["dilate_w"][i], params["dilate_b"][i],
                                   dilation=d) + cond_acts[:, i]
        acts = jnp.tanh(in_act[:, :R, :]) * jax.nn.sigmoid(in_act[:, R:, :])
        if i < nl - 1:
            x = causal_conv1d_ref(acts, params["res_w"][i], params["res_b"][i]) + x
        skip = causal_conv1d_ref(acts, params["skip_w"][i], params["skip_b"][i])
        output = skip if i == 0 else output + skip

    output = jax.nn.relu(output)
    output = causal_conv1d_ref(output, params["conv_out_w"], None)
    output = jax.nn.relu(output)
    output = causal_conv1d_ref(output, params["conv_end_w"], None)
    return jnp.concatenate(
        [jnp.zeros_like(output[:, :, :1]), output[:, :, :-1]], axis=2)


# ----------------------------------------------------------------------------
# Parameter init (mirrors the PyTorch module's init scheme)
# ----------------------------------------------------------------------------
_GAIN = {"linear": 1.0, "tanh": 5.0 / 3.0, "relu": math.sqrt(2.0)}


def _init_conv(key, in_ch, out_ch, k, gain_name, bias=True):
    kw, kb = jax.random.split(key)
    fan_in, fan_out = in_ch * k, out_ch * k
    a = _GAIN[gain_name] * math.sqrt(6.0 / (fan_in + fan_out))
    w = jax.random.uniform(kw, (out_ch, in_ch, k), jnp.float32, -a, a)
    if not bias:
        return w, None
    bb = 1.0 / math.sqrt(fan_in)
    return w, jax.random.uniform(kb, (out_ch,), jnp.float32, -bb, bb)


def init_wavenet_params(key, cfg):
    R, nl = cfg["n_residual_channels"], cfg["n_layers"]
    keys = iter(jax.random.split(key, 8 + 3 * nl))
    p = {}
    cw, cb = jax.random.split(next(keys))
    bound = 1.0 / math.sqrt(cfg["n_cond_channels"] * cfg["upsamp_window"])
    p["upsample_w"] = jax.random.uniform(
        cw, (cfg["n_cond_channels"], cfg["n_cond_channels"], cfg["upsamp_window"]),
        jnp.float32, -bound, bound)
    p["upsample_b"] = jax.random.uniform(cb, (cfg["n_cond_channels"],),
                                         jnp.float32, -bound, bound)
    p["embed"] = jax.random.normal(next(keys), (cfg["n_in_channels"], R), jnp.float32)
    p["cond_w"], p["cond_b"] = _init_conv(next(keys), cfg["n_cond_channels"],
                                          2 * R * nl, 1, "tanh")
    p["dilate_w"], p["dilate_b"] = [], []
    p["res_w"], p["res_b"] = [], []
    p["skip_w"], p["skip_b"] = [], []
    for i in range(nl):
        w, b = _init_conv(next(keys), R, 2 * R, 2, "tanh")
        p["dilate_w"].append(w); p["dilate_b"].append(b)
        if i < nl - 1:
            w, b = _init_conv(next(keys), R, R, 1, "linear")
            p["res_w"].append(w); p["res_b"].append(b)
        else:
            next(keys)
        w, b = _init_conv(next(keys), R, cfg["n_skip_channels"], 1, "relu")
        p["skip_w"].append(w); p["skip_b"].append(b)
    p["conv_out_w"], _ = _init_conv(next(keys), cfg["n_skip_channels"],
                                    cfg["n_out_channels"], 1, "relu", bias=False)
    p["conv_end_w"], _ = _init_conv(next(keys), cfg["n_out_channels"],
                                    cfg["n_out_channels"], 1, "linear", bias=False)
    return p


if __name__ == "__main__":
    # Small config consistent with the module (same structure, reduced sizes).
    cfg = dict(n_in_channels=32, n_layers=4, max_dilation=4,
               n_residual_channels=16, n_skip_channels=32, n_out_channels=32,
               n_cond_channels=8, upsamp_window=16, upsamp_stride=8)
    B, T, L_feat = 2, 200, 25   # upsampled cond length = 208 >= T (exercises slice)

    key = jax.random.PRNGKey(0)
    kp, kf, ki = jax.random.split(key, 3)
    params = init_wavenet_params(kp, cfg)
    features = jax.random.normal(kf, (B, cfg["n_cond_channels"], L_feat), jnp.float32)
    forward_input = jax.random.randint(ki, (B, T), 0, cfg["n_in_channels"], jnp.int32)

    # tile_l=128 -> 2 length tiles: exercises the carried-halo causal tiling path.
    out = wavenet_forward(params, features, forward_input, cfg, tile_l=128)
    out = jax.block_until_ready(out)

    ref = wavenet_forward_ref(params, features, forward_input, cfg)
    ref = jax.block_until_ready(ref)

    assert out.shape == (B, cfg["n_out_channels"], T), out.shape
    assert jnp.allclose(out, ref, atol=2e-4, rtol=2e-4), \
        float(jnp.max(jnp.abs(out - ref)))
    print("KERNEL_OK")
</pallas_src>

<mosaic_0001>
module attributes {stable_mosaic.version = 11 : i64} {
  func.func @_causal_conv_kernel(%arg0: i32, %arg1: i32, %arg2: memref<1x8x128xf32, #tpu.memory_space<vmem>>, %arg3: memref<128x8xf32, #tpu.memory_space<vmem>>, %arg4: memref<128x1xf32, #tpu.memory_space<vmem>>, %arg5: memref<1x128x128xf32, #tpu.memory_space<vmem>>) attributes {dimension_semantics = [#tpu.dimension_semantics<parallel>, #tpu.dimension_semantics<parallel>], iteration_bounds = array<i64: 2, 2>, scalar_prefetch = 0 : i64, scratch_operands = 0 : i64, tpu.core_type = #tpu.core_type<tc>, window_params = [{transform_indices = @transform_0, window_bounds = array<i64: 1, 8, 128>}, {pipeline_mode = #tpu.pipeline_mode<synchronous>, transform_indices = @transform_1, window_bounds = array<i64: 128, 8>}, {pipeline_mode = #tpu.pipeline_mode<synchronous>, transform_indices = @transform_2, window_bounds = array<i64: 128, 1>}, {transform_indices = @transform_3, window_bounds = array<i64: 1, 128, 128>}]} {
    %c0 = arith.constant 0 : index
    %c0_0 = arith.constant 0 : index
    %c0_1 = arith.constant 0 : index
    %0 = vector.load %arg2[%c0, %c0_0, %c0_1] : memref<1x8x128xf32, #tpu.memory_space<vmem>>, vector<1x8x128xf32>
    %1 = vector.shape_cast %0 : vector<1x8x128xf32> to vector<8x128xf32>
    %c0_2 = arith.constant 0 : index
    %c0_3 = arith.constant 0 : index
    %2 = vector.load %arg3[%c0_2, %c0_3] : memref<128x8xf32, #tpu.memory_space<vmem>>, vector<128x8xf32>
    %cst = arith.constant dense<0.000000e+00> : vector<128x128xf32>
    %3 = tpu.matmul %2, %1, %cst {dimension_numbers = #tpu.dot_dimension_numbers<[1], [0], [0], [1], [0, 0, 1, 1], [], []>} : vector<128x8xf32>, vector<8x128xf32>, vector<128x128xf32> -> vector<128x128xf32>
    %c0_4 = arith.constant 0 : index
    %c0_5 = arith.constant 0 : index
    %4 = vector.load %arg4[%c0_4, %c0_5] : memref<128x1xf32, #tpu.memory_space<vmem>>, vector<128x1xf32>
    %5 = vector.broadcast %4 : vector<128x1xf32> to vector<128x128xf32>
    %6 = arith.addf %3, %5 : vector<128x128xf32>
    %c0_6 = arith.constant 0 : index
    %c0_7 = arith.constant 0 : index
    %c0_8 = arith.constant 0 : index
    %7 = vector.load %arg5[%c0_6, %c0_7, %c0_8] : memref<1x128x128xf32, #tpu.memory_space<vmem>>, vector<1x128x128xf32>
    %8 = vector.shape_cast %7 : vector<1x128x128xf32> to vector<128x128xf32>
    %9 = vector.shape_cast %6 : vector<128x128xf32> to vector<1x128x128xf32>
    tpu.vector_store %arg5[%c0_6, %c0_7, %c0_8], %9 {strides = array<i32>} : memref<1x128x128xf32, #tpu.memory_space<vmem>>, vector<1x128x128xf32>,
    return
  }
  func.func @transform_0(%arg0: i32, %arg1: i32) -> (i32, i32, i32) {
    %c0_i32 = arith.constant 0 : i32
    %c0_i32_0 = arith.constant 0 : i32
    return %arg0, %c0_i32, %arg1 : i32, i32, i32
  }
  func.func @transform_1(%arg0: i32, %arg1: i32) -> (i32, i32) {
    %c0_i32 = arith.constant 0 : i32
    %c0_i32_0 = arith.constant 0 : i32
    %c0_i32_1 = arith.constant 0 : i32
    return %c0_i32, %c0_i32_0 : i32, i32
  }
  func.func @transform_2(%arg0: i32, %arg1: i32) -> (i32, i32) {
    %c0_i32 = arith.constant 0 : i32
    %c0_i32_0 = arith.constant 0 : i32
    %c0_i32_1 = arith.constant 0 : i32
    return %c0_i32, %c0_i32_0 : i32, i32
  }
  func.func @transform_3(%arg0: i32, %arg1: i32) -> (i32, i32, i32) {
    %c0_i32 = arith.constant 0 : i32
    %c0_i32_0 = arith.constant 0 : i32
    return %arg0, %c0_i32, %arg1 : i32, i32, i32
  }
}

</mosaic_0001>

<llo_original>
// kernel: tpu_custom_call.1
$region0: #{tpu_custom_call.1}
  #allocation0 [shape = 'u32[]', space=smem, size = 0x4, offset = 0x4, fixed_abs, tag = 'smem constant byte address 0x4 - core index']
  #allocation1 [shape = 'u32[144,128]{1,0:T(1,128)}', space=vmem, size = 0x12000, scoped, tag = 'internal scratch']
  %s0 = inlined_call_operand.vmem [shape: f32[2,8,256], index: 0, kind: input, shape index: {}]
  %s1 = inlined_call_operand.vmem [shape: f32[128,8], index: 1, kind: input, shape index: {}]
  %s2 = inlined_call_operand.vmem [shape: f32[128,1], index: 2, kind: input, shape index: {}]
  %s3 = inlined_call_operand.hbm [shape: f32[2,128,256], index: 3, kind: output, shape index: {}]
  %s4 = sld [smem:[#allocation0]]
  $region45: #{tpu_custom_call.1} parent=0
    _
  %s6 = ssub.s32 1, %s4
  %s7 = scalar_select 0, %s6, %s4
  $region1: #{tpu_custom_call.1} parent=0
    #allocation2 [shape = 'u8[131072]{0}', space=vmem, size = 0x20000, scoped, tag = 'output window, operand 0']
    #allocation3 [shape = 's32[2]{0}', space=sflag, size = 0x8, scoped, tag = 'scoped memory for tpu_custom_call.1']
    %8 = vsyncpa [#allocation3], 0
    %s9 = scalar_lea.sflag [#allocation3], 1
    %10 = vsyncpa %s9, 0
    loop: start=0, step=1, limit=6
    $region2: #{tpu_custom_call.1} parent=1 // loop_pre_header
      _
    $region3: #{tpu_custom_call.1} parent=1 // loop_header
      %s12 = sphi 0, %s16
      %p13 = scmp.ge.s32.totalorder %s12, 6
      %s19 = sphi 0, %s31
      %s20 = sphi 0, %s27
      %s21 = sphi 0, %s19
      %s22 = sphi 0, %s20
      %s23 = sphi 0, %s21
      %s24 = sphi 0, %s22
      %s36 = sphi 0, %s38
      %s39 = sphi 0, %s36
      %s40 = sphi 0, %s39
      %s56 = sphi 0, %s40
      %s60 = sphi 0, %s60
      %s62 = sphi 0, %s60
      %s63 = sphi 0, %s62
      %s77 = sphi 0, %s63
      %s81 = sphi 0, %s81
      %s83 = sphi 0, %s81
      %s84 = sphi 0, %s83
      %s98 = sphi 0, %s84
      %s106 = sphi 0, %s108
      %s109 = sphi 0, %s106
      %s110 = sphi 0, %s109
      %s126 = sphi 0, %s110
    $region4: #{tpu_custom_call.1} parent=1 // loop_header_branch
      %15 = sbr.rel (%p13) target = $region8
    $region5: #{tpu_custom_call.1} parent=1 // loop_body
      %s17 = ssub.s32 %s12, 1
      %s18 = ssub.s32 %s12, 2
      %s25 = sadd.s32 1, %s20
      %p26 = scmp.ge.s32.totalorder %s25, 2
      %s27 = scalar_select %p26, 0, %s25
      %s28 = sadd.s32 1, %s19
      %s29 = scalar_select %p26, %s28, %s19
      %p30 = scmp.ge.s32.totalorder %s29, 2
      %s31 = scalar_select %p30, 0, %s29
      %s32 = ssub.s32 %s19, %s31
      %s33 = ssub.s32 %s20, %s27
      %s34 = sor.u32 %s32, %s33
      %p35 = scmp.eq.s32.totalorder %s34, 0
      %s37 = sadd.s32 %s36, 1
      %s38 = scalar_select %p35, %s36, %s37
      %p41 = pneg %p35
      %p42 = scmp.eq.s32.totalorder %s12, 3
      %p43 = por %p41, %p42
      %p44 = scmp.ne.s32.totalorder %s36, %s39
      %p45 = scmp.eq.s32.totalorder %s12, 0
      %p46 = por %p44, %p45
      %p47 = scmp.ne.s32.totalorder %s36, %s39
      %p48 = scmp.eq.s32.totalorder %s17, 3
      %p49 = por %p47, %p48
      %p50 = scmp.ne.s32.totalorder %s39, %s40
      %p51 = scmp.eq.s32.totalorder %s17, 0
      %p52 = por %p50, %p51
      %p53 = scmp.ne.s32.totalorder %s39, %s40
      %p54 = scmp.eq.s32.totalorder %s18, 3
      %p55 = por %p53, %p54
      %p57 = scmp.ne.s32.totalorder %s40, %s56
      %p58 = scmp.eq.s32.totalorder %s18, 0
      %p59 = por %p57, %p58
      %s61 = sadd.s32 %s60, 1
      %p64 = scmp.eq.s32.totalorder %s12, 3
      %p65 = scmp.ne.s32.totalorder %s60, %s62
      %p66 = scmp.eq.s32.totalorder %s12, 0
      %p67 = por %p65, %p66
      %p68 = scmp.ne.s32.totalorder %s60, %s62
      %p69 = scmp.eq.s32.totalorder %s17, 3
      %p70 = por %p68, %p69
      %p71 = scmp.ne.s32.totalorder %s62, %s63
      %p72 = scmp.eq.s32.totalorder %s17, 0
      %p73 = por %p71, %p72
      %p74 = scmp.ne.s32.totalorder %s62, %s63
      %p75 = scmp.eq.s32.totalorder %s18, 3
      %p76 = por %p74, %p75
      %p78 = scmp.ne.s32.totalorder %s63, %s77
      %p79 = scmp.eq.s32.totalorder %s18, 0
      %p80 = por %p78, %p79
      %s82 = sadd.s32 %s81, 1
      %p85 = scmp.eq.s32.totalorder %s12, 3
      %p86 = scmp.ne.s32.totalorder %s81, %s83
      %p87 = scmp.eq.s32.totalorder %s12, 0
      %p88 = por %p86, %p87
      %p89 = scmp.ne.s32.totalorder %s81, %s83
      %p90 = scmp.eq.s32.totalorder %s17, 3
      %p91 = por %p89, %p90
      %p92 = scmp.ne.s32.totalorder %s83, %s84
      %p93 = scmp.eq.s32.totalorder %s17, 0
      %p94 = por %p92, %p93
      %p95 = scmp.ne.s32.totalorder %s83, %s84
      %p96 = scmp.eq.s32.totalorder %s18, 3
      %p97 = por %p95, %p96
      %p99 = scmp.ne.s32.totalorder %s84, %s98
      %p100 = scmp.eq.s32.totalorder %s18, 0
      %p101 = por %p99, %p100
      %s102 = ssub.s32 %s19, %s31
      %s103 = ssub.s32 %s20, %s27
      %s104 = sor.u32 %s102, %s103
      %p105 = scmp.eq.s32.totalorder %s104, 0
      %s107 = sadd.s32 %s106, 1
      %s108 = scalar_select %p105, %s106, %s107
      %p111 = pneg %p105
      %p112 = scmp.eq.s32.totalorder %s12, 3
      %p113 = por %p111, %p112
      %p114 = scmp.ne.s32.totalorder %s106, %s109
      %p115 = scmp.eq.s32.totalorder %s12, 0
      %p116 = por %p114, %p115
      %p117 = scmp.ne.s32.totalorder %s106, %s109
      %p118 = scmp.eq.s32.totalorder %s17, 3
      %p119 = por %p117, %p118
      %p120 = scmp.ne.s32.totalorder %s109, %s110
      %p121 = scmp.eq.s32.totalorder %s17, 0
      %p122 = por %p120, %p121
      %p123 = scmp.ne.s32.totalorder %s109, %s110
      %p124 = scmp.eq.s32.totalorder %s18, 3
      %p125 = por %p123, %p124
      %p127 = scmp.ne.s32.totalorder %s110, %s126
      %p128 = scmp.eq.s32.totalorder %s18, 0
      %p129 = por %p127, %p128
      %p130 = scmp.le.s32.totalorder 1, %s12
      %p131 = scmp.lt.s32.totalorder %s12, 5
      %p132 = pnand %p130, %p131
      %p133 = pneg %p132
      // Predicated region
      $region9: #{tpu_custom_call.1} parent=5 // pred_check
        _
      $region10: #{tpu_custom_call.1} parent=5 // pred_check_branch
        %135 = sbr.rel (%p132) target = $region12
      $region11: #{tpu_custom_call.1} parent=5 // pred_region
        %s136 = ssub.s32 %s12, 1
        // Predicated region
        $region13: #{tpu_custom_call.1} parent=11 // pred_check
          %p137 = pneg %p73
        $region14: #{tpu_custom_call.1} parent=11 // pred_check_branch
          %139 = sbr.rel (%p137) target = $region16
        $region15: #{tpu_custom_call.1} parent=11 // pred_region
          _
        $region16: #{tpu_custom_call.1} parent=11 // pred_fallthru
          _
        // Predicated region
        $region17: #{tpu_custom_call.1} parent=11 // pred_check
          %p140 = pneg %p94
        $region18: #{tpu_custom_call.1} parent=11 // pred_check_branch
          %142 = sbr.rel (%p140) target = $region20
        $region19: #{tpu_custom_call.1} parent=11 // pred_region
          _
        $region20: #{tpu_custom_call.1} parent=11 // pred_fallthru
          _
      $region12: #{tpu_custom_call.1} parent=5 // pred_fallthru
        _
      %p143 = scmp.lt.s32.totalorder %s12, 4
      // Predicated region
      $region21: #{tpu_custom_call.1} parent=5 // pred_check
        %p144 = pneg %p143
      $region22: #{tpu_custom_call.1} parent=5 // pred_check_branch
        %146 = sbr.rel (%p144) target = $region24
      $region23: #{tpu_custom_call.1} parent=5 // pred_region
        // Predicated region
        $region25: #{tpu_custom_call.1} parent=23 // pred_check
          %p147 = pneg %p46
        $region26: #{tpu_custom_call.1} parent=23 // pred_check_branch
          %149 = sbr.rel (%p147) target = $region28
        $region27: #{tpu_custom_call.1} parent=23 // pred_region
          %p150 = scmp.lt.s32.totalorder %s19, 1
          %s151 = scalar_select %p150, %s19, 1
          %p152 = scmp.lt.s32.totalorder %s20, 1
          %s153 = scalar_select %p152, %s20, 1
          %s154 = smul.addr %s151, 2
          %s155 = sadd.s32 %s153, %s154
          %s156 = smul.addr %s155, 8
          %s157 = scalar_lea.vmem %s0, %s156
        $region28: #{tpu_custom_call.1} parent=23 // pred_fallthru
          _
      $region24: #{tpu_custom_call.1} parent=5 // pred_fallthru
        _
      %p158 = scmp.le.s32.totalorder 1, %s12
      %p159 = scmp.lt.s32.totalorder %s12, 5
      %p160 = pnand %p158, %p159
      %p161 = pneg %p160
      // Predicated region
      $region29: #{tpu_custom_call.1} parent=5 // pred_check
        _
      $region30: #{tpu_custom_call.1} parent=5 // pred_check_branch
        %163 = sbr.rel (%p160) target = $region32
      $region31: #{tpu_custom_call.1} parent=5 // pred_region
        %s164 = ssub.s32 %s12, 1
        %p165 = scmp.lt.s32.totalorder %s21, 1
        %s166 = scalar_select %p165, %s21, 1
        %p167 = scmp.lt.s32.totalorder %s22, 1
        %s168 = scalar_select %p167, %s22, 1
        %s169 = smul.addr %s166, 2
        %s170 = sadd.s32 %s168, %s169
        %s171 = smul.addr %s170, 8
        %s172 = scalar_lea.vmem %s0, %s171
        %p173 = pneg %p52
        %p174 = pneg %p49
        %p175 = pneg %p73
        %p176 = pneg %p70
        %p177 = pneg %p94
        %p178 = pneg %p91
        %p179 = pneg %p122
        %p180 = pneg %p119
        %s181 = sand.u32 %s109, 1
        %s182 = scalar_lea.sflag [#allocation3], %s181
        %s183 = sand.u32 %s109, 1
        %s184 = smul.addr %s183, 128
        %s185 = scalar_lea.vmem [#allocation2], %s184
        %p186 = scmp.lt.s32.totalorder %s21, 1
        %s187 = scalar_select %p186, %s21, 1
        %p188 = scmp.lt.s32.totalorder %s22, 1
        %s189 = scalar_select %p188, %s22, 1
        %s190 = smul.addr %s187, 2
        %s191 = sadd.s32 %s189, %s190
        %s192 = smul.addr %s191, 8
        %s193 = scalar_lea.vmem %s0, %s192
        %v194 = vld [vmem:[%s193] sm:$0xff]
        %v195 = vld [vmem:[%s1] sm:$0xff]
        %v196 = vld [vmem:[%s1 + $0x8] sm:$0xff]
        %v197 = vld [vmem:[%s1 + $0x10] sm:$0xff]
        %v198 = vld [vmem:[%s1 + $0x18] sm:$0xff]
        %v199 = vld [vmem:[%s1 + $0x20] sm:$0xff]
        %v200 = vld [vmem:[%s1 + $0x28] sm:$0xff]
        %v201 = vld [vmem:[%s1 + $0x30] sm:$0xff]
        %v202 = vld [vmem:[%s1 + $0x38] sm:$0xff]
        %v203 = vld [vmem:[%s1 + $0x40] sm:$0xff]
        %v204 = vld [vmem:[%s1 + $0x48] sm:$0xff]
        %v205 = vld [vmem:[%s1 + $0x50] sm:$0xff]
        %v206 = vld [vmem:[%s1 + $0x58] sm:$0xff]
        %v207 = vld [vmem:[%s1 + $0x60] sm:$0xff]
        %v208 = vld [vmem:[%s1 + $0x68] sm:$0xff]
        %v209 = vld [vmem:[%s1 + $0x70] sm:$0xff]
        %v210 = vld [vmem:[%s1 + $0x78] sm:$0xff]
        %v211 = vld [vmem:[%s2] sm:$0xff]
        %v212 = vld [vmem:[%s2 + $0x8] sm:$0xff]
        %v213 = vld [vmem:[%s2 + $0x10] sm:$0xff]
        %v214 = vld [vmem:[%s2 + $0x18] sm:$0xff]
        %v215 = vld [vmem:[%s2 + $0x20] sm:$0xff]
        %v216 = vld [vmem:[%s2 + $0x28] sm:$0xff]
        %v217 = vld [vmem:[%s2 + $0x30] sm:$0xff]
        %v218 = vld [vmem:[%s2 + $0x38] sm:$0xff]
        %v219 = vld [vmem:[%s2 + $0x40] sm:$0xff]
        %v220 = vld [vmem:[%s2 + $0x48] sm:$0xff]
        %v221 = vld [vmem:[%s2 + $0x50] sm:$0xff]
        %v222 = vld [vmem:[%s2 + $0x58] sm:$0xff]
        %v223 = vld [vmem:[%s2 + $0x60] sm:$0xff]
        %v224 = vld [vmem:[%s2 + $0x68] sm:$0xff]
        %v225 = vld [vmem:[%s2 + $0x70] sm:$0xff]
        %v226 = vld [vmem:[%s2 + $0x78] sm:$0xff]
        %228 = vset.pattern.permute.xlu0 0
        %229 = vperm.xlu0 %228, %v211
        %v230 = vpop.permute.xlu0 %229
        %233 = vset.pattern.permute.xlu0 0
        %234 = vperm.xlu0 %233, %v212
        %v235 = vpop.permute.xlu0 %234
        %238 = vset.pattern.permute.xlu0 0
        %239 = vperm.xlu0 %238, %v213
        %v240 = vpop.permute.xlu0 %239
        %243 = vset.pattern.permute.xlu0 0
        %244 = vperm.xlu0 %243, %v214
        %v245 = vpop.permute.xlu0 %244
        %248 = vset.pattern.permute.xlu0 0
        %249 = vperm.xlu0 %248, %v215
        %v250 = vpop.permute.xlu0 %249
        %253 = vset.pattern.permute.xlu0 0
        %254 = vperm.xlu0 %253, %v216
        %v255 = vpop.permute.xlu0 %254
        %258 = vset.pattern.permute.xlu0 0
        %259 = vperm.xlu0 %258, %v217
        %v260 = vpop.permute.xlu0 %259
        %263 = vset.pattern.permute.xlu0 0
        %264 = vperm.xlu0 %263, %v218
        %v265 = vpop.permute.xlu0 %264
        %268 = vset.pattern.permute.xlu0 0
        %269 = vperm.xlu0 %268, %v219
        %v270 = vpop.permute.xlu0 %269
        %273 = vset.pattern.permute.xlu0 0
        %274 = vperm.xlu0 %273, %v220
        %v275 = vpop.permute.xlu0 %274
        %278 = vset.pattern.permute.xlu0 0
        %279 = vperm.xlu0 %278, %v221
        %v280 = vpop.permute.xlu0 %279
        %283 = vset.pattern.permute.xlu0 0
        %284 = vperm.xlu0 %283, %v222
        %v285 = vpop.permute.xlu0 %284
        %288 = vset.pattern.permute.xlu0 0
        %289 = vperm.xlu0 %288, %v223
        %v290 = vpop.permute.xlu0 %289
        %293 = vset.pattern.permute.xlu0 0
        %294 = vperm.xlu0 %293, %v224
        %v295 = vpop.permute.xlu0 %294
        %298 = vset.pattern.permute.xlu0 0
        %299 = vperm.xlu0 %298, %v225
        %v300 = vpop.permute.xlu0 %299
        %303 = vset.pattern.permute.xlu0 0
        %304 = vperm.xlu0 %303, %v226
        %v305 = vpop.permute.xlu0 %304
        %vm307 = vcmask 64512
        %v309 = vsel %vm307, %v195, 0
        %v312 = vsel %vm307, %v196, 0
        %v315 = vsel %vm307, %v197, 0
        %v318 = vsel %vm307, %v198, 0
        %v321 = vsel %vm307, %v199, 0
        %v324 = vsel %vm307, %v200, 0
        %v327 = vsel %vm307, %v201, 0
        %v330 = vsel %vm307, %v202, 0
        %v333 = vsel %vm307, %v203, 0
        %v336 = vsel %vm307, %v204, 0
        %v339 = vsel %vm307, %v205, 0
        %v342 = vsel %vm307, %v206, 0
        %v345 = vsel %vm307, %v207, 0
        %v348 = vsel %vm307, %v208, 0
        %v351 = vsel %vm307, %v209, 0
        %v354 = vsel %vm307, %v210, 0
        %356 = vmatprep.subr.mxu0 0.0
        %357 = vmatpush1.msra.mxu0 %v194
        %358 = vmatprep.subr.mxu0 0.0
        %359 = vmatpush1.msra.mxu0 0.0
        %360 = vmatprep.subr.mxu0 0.0
        %361 = vmatpush1.msra.mxu0 0.0
        %362 = vmatprep.subr.mxu0 0.0
        %363 = vmatpush1.msra.mxu0 0.0
        %364 = vmatprep.subr.mxu0 0.0
        %365 = vmatpush1.msra.mxu0 0.0
        %366 = vmatprep.subr.mxu0 0.0
        %367 = vmatpush1.msra.mxu0 0.0
        %368 = vmatprep.subr.mxu0 0.0
        %369 = vmatpush1.msra.mxu0 0.0
        %370 = vmatprep.subr.mxu0 0.0
        %371 = vmatpush1.msra.mxu0 0.0
        %372 = vmatprep.subr.mxu0 0.0
        %373 = vmatpush1.msra.mxu0 0.0
        %374 = vmatprep.subr.mxu0 0.0
        %375 = vmatpush1.msra.mxu0 0.0
        %376 = vmatprep.subr.mxu0 0.0
        %377 = vmatpush1.msra.mxu0 0.0
        %378 = vmatprep.subr.mxu0 0.0
        %379 = vmatpush1.msra.mxu0 0.0
        %380 = vmatprep.subr.mxu0 0.0
        %381 = vmatpush1.msra.mxu0 0.0
        %382 = vmatprep.subr.mxu0 0.0
        %383 = vmatpush1.msra.mxu0 0.0
        %384 = vmatprep.subr.mxu0 0.0
        %385 = vmatpush1.msra.mxu0 0.0
        %386 = vmatprep.subr.mxu0 0.0
        %387 = vmatpush1.msra.mxu0 0.0
        %388 = vmatprep.subr.mxu0 0.0
        %389 = vmatpush1.msra.mxu0 0.0
        %390 = vmatprep.subr.mxu0 0.0
        %391 = vmatpush1.msra.mxu0 0.0
        %392 = vmatprep.subr.mxu0 0.0
        %393 = vmatpush1.msra.mxu0 0.0
        %394 = vmatprep.subr.mxu0 0.0
        %395 = vmatpush1.msra.mxu0 0.0
        %396 = vmatprep.subr.mxu0 0.0
        %397 = vmatpush1.msra.mxu0 0.0
        %398 = vmatprep.subr.mxu0 0.0
        %399 = vmatpush1.msra.mxu0 0.0
        %400 = vmatprep.subr.mxu0 0.0
        %401 = vmatpush1.msra.mxu0 0.0
        %402 = vmatprep.subr.mxu0 0.0
        %403 = vmatpush1.msra.mxu0 0.0
        %404 = vmatprep.subr.mxu0 0.0
        %405 = vmatpush1.msra.mxu0 0.0
        %406 = vmatprep.subr.mxu0 0.0
        %407 = vmatpush1.msra.mxu0 0.0
        %408 = vmatprep.subr.mxu0 0.0
        %409 = vmatpush1.msra.mxu0 0.0
        %410 = vmatprep.subr.mxu0 0.0
        %411 = vmatpush1.msra.mxu0 0.0
        %412 = vmatprep.subr.mxu0 0.0
        %413 = vmatpush1.msra.mxu0 0.0
        %414 = vmatprep.subr.mxu0 0.0
        %415 = vmatpush1.msra.mxu0 0.0
        %416 = vmatprep.subr.mxu0 0.0
        %417 = vmatpush1.msra.mxu0 0.0
        %418 = vmatprep.subr.mxu0 0.0
        %419 = vmatpush1.msra.mxu0 0.0
        %420 = vmatprep.mubr.f32.mxu0 0.0
        %421 = vmatmul.mubr.f32.gmra.mrb[0].mxu0 %v309
        %v422 = vpop.f32.mrb[0].mxu0
        %v423 = vadd.f32 %v230, %v422
        %v424 = vpop.f32.mrb[0].mxu0
        %425 = vmatprep.mubr.f32.mxu0 0.0
        %426 = vmatmul.mubr.f32.gmra.mrb[0].mxu0 %v312
        %v427 = vpop.f32.mrb[0].mxu0
        %v428 = vadd.f32 %v235, %v427
        %v429 = vpop.f32.mrb[0].mxu0
        %430 = vmatprep.mubr.f32.mxu0 0.0
        %431 = vmatmul.mubr.f32.gmra.mrb[0].mxu0 %v315
        %v432 = vpop.f32.mrb[0].mxu0
        %v433 = vadd.f32 %v240, %v432
        %v434 = vpop.f32.mrb[0].mxu0
        %435 = vmatprep.mubr.f32.mxu0 0.0
        %436 = vmatmul.mubr.f32.gmra.mrb[0].mxu0 %v318
        %v437 = vpop.f32.mrb[0].mxu0
        %v438 = vadd.f32 %v245, %v437
        %v439 = vpop.f32.mrb[0].mxu0
        %440 = vmatprep.mubr.f32.mxu0 0.0
        %441 = vmatmul.mubr.f32.gmra.mrb[0].mxu0 %v321
        %v442 = vpop.f32.mrb[0].mxu0
        %v443 = vadd.f32 %v250, %v442
        %v444 = vpop.f32.mrb[0].mxu0
        %445 = vmatprep.mubr.f32.mxu0 0.0
        %446 = vmatmul.mubr.f32.gmra.mrb[0].mxu0 %v324
        %v447 = vpop.f32.mrb[0].mxu0
        %v448 = vadd.f32 %v255, %v447
        %v449 = vpop.f32.mrb[0].mxu0
        %450 = vmatprep.mubr.f32.mxu0 0.0
        %451 = vmatmul.mubr.f32.gmra.mrb[0].mxu0 %v327
        %v452 = vpop.f32.mrb[0].mxu0
        %v453 = vadd.f32 %v260, %v452
        %v454 = vpop.f32.mrb[0].mxu0
        %455 = vmatprep.mubr.f32.mxu0 0.0
        %456 = vmatmul.mubr.f32.gmra.mrb[0].mxu0 %v330
        %v457 = vpop.f32.mrb[0].mxu0
        %v458 = vadd.f32 %v265, %v457
        %v459 = vpop.f32.mrb[0].mxu0
        %460 = vmatprep.mubr.f32.mxu0 0.0
        %461 = vmatmul.mubr.f32.gmra.mrb[0].mxu0 %v333
        %v462 = vpop.f32.mrb[0].mxu0
        %v463 = vadd.f32 %v270, %v462
        %v464 = vpop.f32.mrb[0].mxu0
        %465 = vmatprep.mubr.f32.mxu0 0.0
        %466 = vmatmul.mubr.f32.gmra.mrb[0].mxu0 %v336
        %v467 = vpop.f32.mrb[0].mxu0
        %v468 = vadd.f32 %v275, %v467
        %v469 = vpop.f32.mrb[0].mxu0
        %470 = vmatprep.mubr.f32.mxu0 0.0
        %471 = vmatmul.mubr.f32.gmra.mrb[0].mxu0 %v339
        %v472 = vpop.f32.mrb[0].mxu0
        %v473 = vadd.f32 %v280, %v472
        %v474 = vpop.f32.mrb[0].mxu0
        %475 = vmatprep.mubr.f32.mxu0 0.0
        %476 = vmatmul.mubr.f32.gmra.mrb[0].mxu0 %v342
        %v477 = vpop.f32.mrb[0].mxu0
        %v478 = vadd.f32 %v285, %v477
        %v479 = vpop.f32.mrb[0].mxu0
        %480 = vmatprep.mubr.f32.mxu0 0.0
        %481 = vmatmul.mubr.f32.gmra.mrb[0].mxu0 %v345
        %v482 = vpop.f32.mrb[0].mxu0
        %v483 = vadd.f32 %v290, %v482
        %v484 = vpop.f32.mrb[0].mxu0
        %485 = vmatprep.mubr.f32.mxu0 0.0
        %486 = vmatmul.mubr.f32.gmra.mrb[0].mxu0 %v348
        %v487 = vpop.f32.mrb[0].mxu0
        %v488 = vadd.f32 %v295, %v487
        %v489 = vpop.f32.mrb[0].mxu0
        %490 = vmatprep.mubr.f32.mxu0 0.0
        %491 = vmatmul.mubr.f32.gmra.mrb[0].mxu0 %v351
        %v492 = vpop.f32.mrb[0].mxu0
        %v493 = vadd.f32 %v300, %v492
        %v494 = vpop.f32.mrb[0].mxu0
        %495 = vmatprep.mubr.f32.mxu0 0.0
        %496 = vmatmul.mubr.f32.gmra.mrb[0].mxu0 %v354
        %v497 = vpop.f32.mrb[0].mxu0
        %v498 = vadd.f32 %v305, %v497
        %v499 = vpop.f32.mrb[0].mxu0
        %500 = vdwg.mxu0
        %501 = vst [vmem:[%s185] sm:$0xff] %v423
        %502 = vst [vmem:[%s185 + $0x8] sm:$0xff] %v428
        %503 = vst [vmem:[%s185 + $0x10] sm:$0xff] %v433
        %504 = vst [vmem:[%s185 + $0x18] sm:$0xff] %v438
        %505 = vst [vmem:[%s185 + $0x20] sm:$0xff] %v443
        %506 = vst [vmem:[%s185 + $0x28] sm:$0xff] %v448
        %507 = vst [vmem:[%s185 + $0x30] sm:$0xff] %v453
        %508 = vst [vmem:[%s185 + $0x38] sm:$0xff] %v458
        %509 = vst [vmem:[%s185 + $0x40] sm:$0xff] %v463
        %510 = vst [vmem:[%s185 + $0x48] sm:$0xff] %v468
        %511 = vst [vmem:[%s185 + $0x50] sm:$0xff] %v473
        %512 = vst [vmem:[%s185 + $0x58] sm:$0xff] %v478
        %513 = vst [vmem:[%s185 + $0x60] sm:$0xff] %v483
        %514 = vst [vmem:[%s185 + $0x68] sm:$0xff] %v488
        %515 = vst [vmem:[%s185 + $0x70] sm:$0xff] %v493
        %516 = vst [vmem:[%s185 + $0x78] sm:$0xff] %v498
        %s517 = sand.u32 %s109, 1
        %s518 = scalar_lea.sflag [#allocation3], %s517
        %s519 = sand.u32 %s109, 1
        %s520 = smul.addr %s519, 128
        %s521 = scalar_lea.vmem [#allocation2], %s520
        // Predicated region
        $region33: #{tpu_custom_call.1} parent=31 // pred_check
          %p522 = pneg %p119
        $region34: #{tpu_custom_call.1} parent=31 // pred_check_branch
          %524 = sbr.rel (%p522) target = $region36
        $region35: #{tpu_custom_call.1} parent=31 // pred_region
          %s526 = ssub.s32 2048, 2048
          %527 = vsyncadd %s518, %s526
          %s528 = smul.addr %s21, 32
          %s529 = sadd.s32 %s22, %s528
          %s530 = smul.addr %s529, 128
          %s531 = scalar_lea.hbm %s3, %s530
          %s532 = sshll.u32 %s521, 4
          %s533 = int_to_ptr.vmem [resolvable:$true] %s532
          %538 = dma.vmem_to_hbm [thread:$0]  %s533, 2048, %s531, %s518, 128, 256, 8
        $region36: #{tpu_custom_call.1} parent=31 // pred_fallthru
          _
      $region32: #{tpu_custom_call.1} parent=5 // pred_fallthru
        _
      %p539 = scmp.le.s32.totalorder 2, %s12
      // Predicated region
      $region37: #{tpu_custom_call.1} parent=5 // pred_check
        %p540 = pneg %p539
      $region38: #{tpu_custom_call.1} parent=5 // pred_check_branch
        %542 = sbr.rel (%p540) target = $region40
      $region39: #{tpu_custom_call.1} parent=5 // pred_region
        %s543 = ssub.s32 %s12, 2
        // Predicated region
        $region41: #{tpu_custom_call.1} parent=39 // pred_check
          %p544 = pneg %p125
        $region42: #{tpu_custom_call.1} parent=39 // pred_check_branch
          %546 = sbr.rel (%p544) target = $region44
        $region43: #{tpu_custom_call.1} parent=39 // pred_region
          %s547 = sand.u32 %s110, 1
          %s548 = scalar_lea.sflag [#allocation3], %s547
          %s549 = sand.u32 %s110, 1
          %s550 = smul.addr %s549, 128
          %s551 = scalar_lea.vmem [#allocation2], %s550
          %552 = dma.done %s548, 2048
        $region44: #{tpu_custom_call.1} parent=39 // pred_fallthru
          _
      $region40: #{tpu_custom_call.1} parent=5 // pred_fallthru
        _
    $region6: #{tpu_custom_call.1} parent=1 // loop_footer
      %s16 = sadd.s32 1, %s12
    $region7: #{tpu_custom_call.1} parent=1 // loop_footer_branch
      %11 = sbr.rel target = $region3
    $region8: #{tpu_custom_call.1} parent=1 // loop_exit
      _
    %553 = vsyncpa [#allocation3], 1
    %s554 = scalar_lea.sflag [#allocation3], 1
    %555 = vsyncpa %s554, 1

</llo_original>
